<compile_context>
chip_gen: v6e
topology: v6e:2x2x1
jax: 0.10.0
libtpu: 0.0.40
codegen_flags: <defaults>
</compile_context>

<pallas_src>
import functools

import jax
import jax.numpy as jnp
from jax.experimental import pallas as pl
from jax.experimental.pallas import tpu as pltpu


def _maxout_kernel(x_ref, w_ref, b_ref, o_ref, *, k: int, tn: int):
    # x_ref: (B, IN) bf16        -- resident across all grid steps
    # w_ref: (IN, K*TN) bf16     -- fused weight slab for this OUT tile (k-chunks contiguous)
    # b_ref: (1, K*TN) f32       -- matching fused bias slab
    # o_ref: (1, TN) f32         -- output tile, written exactly once
    act = jnp.dot(x_ref[...], w_ref[...], preferred_element_type=jnp.float32)  # (B, K*TN) f32
    # Max over batch first (commutes with +bias since bias is batch-constant),
    # then add the per-k bias, then max over the K lane-chunks.
    col_max = jnp.max(act, axis=0, keepdims=True) + b_ref[...]                 # (1, K*TN)
    m = col_max[:, 0:tn]
    for kk in range(1, k):                                                     # K is small & static
        m = jnp.maximum(m, col_max[:, kk * tn:(kk + 1) * tn])
    o_ref[...] = m


def _pick_tn(in_dim: int, out_dim: int, k: int) -> int:
    """Largest OUT tile (multiple of 128, dividing OUT) whose double-buffered
    bf16 weight slab stays well under the scoped-VMEM default (v7x-safe)."""
    if out_dim % 128 != 0:
        return out_dim  # full-extent block is always legal
    tn = 128
    budget_bytes = 16 * 1024 * 1024  # ~16 MiB for 2x double-buffered weight slabs
    while (out_dim % (tn * 2) == 0
           and 2 * in_dim * k * (tn * 2) * 2 <= budget_bytes
           and tn * 2 <= 2048):
        tn *= 2
    return tn


def maxout_forward(x, w_stacked, b_stacked, *, tn: int | None = None):
    """x: (B, IN) f32; w_stacked: (K, IN, OUT) f32 (i.e. W_i.T stacked);
    b_stacked: (K, OUT) f32  ->  (OUT,) f32."""
    B, IN = x.shape
    K, _, OUT = w_stacked.shape

    if tn is None:
        tn = _pick_tn(IN, OUT, K)
    assert OUT % tn == 0
    n_tiles = OUT // tn

    # Pre-arrange weights once: (K, IN, OUT) -> (IN, T, K, TN) -> (IN, K*OUT),
    # so lane-columns [o*K*TN : (o+1)*K*TN] hold all K chunks of OUT tile o.
    w2d = jnp.transpose(w_stacked, (1, 0, 2))                # (IN, K, OUT)
    w2d = w2d.reshape(IN, K, n_tiles, tn)                    # (IN, K, T, TN)
    w2d = jnp.transpose(w2d, (0, 2, 1, 3))                   # (IN, T, K, TN)
    w2d = w2d.reshape(IN, K * OUT).astype(jnp.bfloat16)      # stream weights in bf16

    b2d = b_stacked.reshape(K, n_tiles, tn)                  # (K, T, TN)
    b2d = jnp.transpose(b2d, (1, 0, 2)).reshape(1, K * OUT).astype(jnp.float32)

    x_bf = x.astype(jnp.bfloat16)

    kernel = functools.partial(_maxout_kernel, k=K, tn=tn)

    out = pl.pallas_call(
        kernel,
        out_shape=jax.ShapeDtypeStruct((1, OUT), jnp.float32),
        grid_spec=pltpu.PrefetchScalarGridSpec(
            num_scalar_prefetch=0,
            grid=(n_tiles,),
            in_specs=[
                pl.BlockSpec((B, IN), lambda o: (0, 0)),            # x: DMA'd once, resident
                pl.BlockSpec((IN, K * tn), lambda o: (0, o)),       # fused weight slab for tile o
                pl.BlockSpec((1, K * tn), lambda o: (0, o)),        # fused bias slab for tile o
            ],
            out_specs=pl.BlockSpec((1, tn), lambda o: (0, o)),      # written once per tile
        ),
        compiler_params=pltpu.CompilerParams(
            dimension_semantics=("parallel",),  # OUT tiles are independent (megacore on v7x)
        ),
    )(x_bf, w2d, b2d)
    return out[0]  # (OUT,)


if __name__ == "__main__":
    # Small, module-consistent shapes.
    B, IN, OUT, K = 8, 32, 128, 4

    key = jax.random.PRNGKey(0)
    kx, kw, kb = jax.random.split(key, 3)

    x = jax.random.normal(kx, (B, IN), dtype=jnp.float32)
    # Deterministic synthetic parameters (PyTorch Linear weight is (OUT, IN); we store W.T).
    w_stacked = jax.random.normal(kw, (K, IN, OUT), dtype=jnp.float32) * 0.1
    b_stacked = jax.random.normal(kb, (K, OUT), dtype=jnp.float32) * 0.1

    y = maxout_forward(x, w_stacked, b_stacked)
    y = jax.block_until_ready(y)

    # Pure-JAX f32 reference for correctness (kernel streams bf16 -> loosened tolerance).
    acts = jnp.einsum("bi,kio->kbo", x, w_stacked) + b_stacked[:, None, :]  # (K, B, OUT)
    y_ref = jnp.max(acts.reshape(K * B, OUT), axis=0)                       # (OUT,)
    assert y.shape == (OUT,)
    assert jnp.allclose(y, y_ref, atol=3e-2, rtol=3e-2), "mismatch vs reference"

    print("KERNEL_OK")
</pallas_src>

<mosaic_0001>
module attributes {stable_mosaic.version = 11 : i64} {
  func.func @_maxout_kernel(%arg0: i32, %arg1: memref<8x32xbf16, #tpu.memory_space<vmem>>, %arg2: memref<32x512xbf16, #tpu.memory_space<vmem>>, %arg3: memref<1x512xf32, #tpu.memory_space<vmem>>, %arg4: memref<1x128xf32, #tpu.memory_space<vmem>>) attributes {dimension_semantics = [#tpu.dimension_semantics<parallel>], iteration_bounds = array<i64: 1>, scalar_prefetch = 0 : i64, scratch_operands = 0 : i64, tpu.core_type = #tpu.core_type<tc>, window_params = [{pipeline_mode = #tpu.pipeline_mode<synchronous>, transform_indices = @transform_0, window_bounds = array<i64: 8, 32>}, {transform_indices = @transform_1, window_bounds = array<i64: 32, 512>}, {transform_indices = @transform_2, window_bounds = array<i64: 1, 512>}, {transform_indices = @transform_3, window_bounds = array<i64: 1, 128>}]} {
    %c0 = arith.constant 0 : index
    %c0_0 = arith.constant 0 : index
    %0 = vector.load %arg1[%c0, %c0_0] : memref<8x32xbf16, #tpu.memory_space<vmem>>, vector<8x32xbf16>
    %c0_1 = arith.constant 0 : index
    %c0_2 = arith.constant 0 : index
    %1 = vector.load %arg2[%c0_1, %c0_2] : memref<32x512xbf16, #tpu.memory_space<vmem>>, vector<32x512xbf16>
    %cst = arith.constant dense<0.000000e+00> : vector<8x512xf32>
    %2 = tpu.matmul %0, %1, %cst {dimension_numbers = #tpu.dot_dimension_numbers<[1], [0], [0], [1], [0, 0, 1, 1], [], []>} : vector<8x32xbf16>, vector<32x512xbf16>, vector<8x512xf32> -> vector<8x512xf32>
    %cst_3 = arith.constant dense<0xFF800000> : vector<512xf32>
    %3 = vector.multi_reduction <maximumf>, %2, %cst_3 [0] : vector<8x512xf32> to vector<512xf32>
    %4 = vector.shape_cast %3 : vector<512xf32> to vector<1x512xf32>
    %c0_4 = arith.constant 0 : index
    %c0_5 = arith.constant 0 : index
    %5 = vector.load %arg3[%c0_4, %c0_5] : memref<1x512xf32, #tpu.memory_space<vmem>>, vector<1x512xf32>
    %6 = arith.addf %4, %5 : vector<1x512xf32>
    %7 = vector.extract_strided_slice %6 {offsets = [0, 0], sizes = [1, 128], strides = [1, 1]} : vector<1x512xf32> to vector<1x128xf32>
    %8 = vector.extract_strided_slice %6 {offsets = [0, 128], sizes = [1, 128], strides = [1, 1]} : vector<1x512xf32> to vector<1x128xf32>
    %9 = arith.maximumf %7, %8 : vector<1x128xf32>
    %10 = vector.extract_strided_slice %6 {offsets = [0, 256], sizes = [1, 128], strides = [1, 1]} : vector<1x512xf32> to vector<1x128xf32>
    %11 = arith.maximumf %9, %10 : vector<1x128xf32>
    %12 = vector.extract_strided_slice %6 {offsets = [0, 384], sizes = [1, 128], strides = [1, 1]} : vector<1x512xf32> to vector<1x128xf32>
    %13 = arith.maximumf %11, %12 : vector<1x128xf32>
    %c0_6 = arith.constant 0 : index
    %c0_7 = arith.constant 0 : index
    %14 = vector.load %arg4[%c0_6, %c0_7] : memref<1x128xf32, #tpu.memory_space<vmem>>, vector<1x128xf32>
    tpu.vector_store %arg4[%c0_6, %c0_7], %13 {strides = array<i32>} : memref<1x128xf32, #tpu.memory_space<vmem>>, vector<1x128xf32>,
    return
  }
  func.func @transform_0(%arg0: i32) -> (i32, i32) {
    %c0_i32 = arith.constant 0 : i32
    %c0_i32_0 = arith.constant 0 : i32
    %c0_i32_1 = arith.constant 0 : i32
    return %c0_i32, %c0_i32_0 : i32, i32
  }
  func.func @transform_1(%arg0: i32) -> (i32, i32) {
    %c0_i32 = arith.constant 0 : i32
    %c0_i32_0 = arith.constant 0 : i32
    return %c0_i32, %arg0 : i32, i32
  }
  func.func @transform_2(%arg0: i32) -> (i32, i32) {
    %c0_i32 = arith.constant 0 : i32
    %c0_i32_0 = arith.constant 0 : i32
    return %c0_i32, %arg0 : i32, i32
  }
  func.func @transform_3(%arg0: i32) -> (i32, i32) {
    %c0_i32 = arith.constant 0 : i32
    %c0_i32_0 = arith.constant 0 : i32
    return %c0_i32, %arg0 : i32, i32
  }
}

</mosaic_0001>

<llo_original>
// kernel: tpu_custom_call.1
$region0: #{tpu_custom_call.1}
  #allocation0 [shape = 'u32[]', space=smem, size = 0x4, offset = 0x4, fixed_abs, tag = 'smem constant byte address 0x4 - core index']
  #allocation1 [shape = 'u32[144,128]{1,0:T(1,128)}', space=vmem, size = 0x12000, scoped, tag = 'internal scratch']
  %s0 = inlined_call_operand.hbm [shape: bf16[8,32], index: 0, kind: input, shape index: {}]
  %s1 = inlined_call_operand.hbm [shape: bf16[32,512], index: 1, kind: input, shape index: {}]
  %s2 = inlined_call_operand.hbm [shape: f32[1,512], index: 2, kind: input, shape index: {}]
  %s3 = inlined_call_operand.hbm [shape: f32[1,128], index: 3, kind: output, shape index: {}]
  %s4 = sld [smem:[#allocation0]]
  $region34: #{tpu_custom_call.1} parent=0
    _
  %s6 = ssub.s32 1, %s4
  %s7 = scalar_select 0, %s6, %s4
  $region1: #{tpu_custom_call.1} parent=0
    #allocation2 [shape = 'u8[2048]{0}', space=vmem, size = 0x800, scoped, tag = 'input window, operand 0, single buffered']
    #allocation3 [shape = 's32[1]{0}', space=sflag, size = 0x4, scoped, tag = 'scoped memory for tpu_custom_call.1']
    #allocation4 [shape = 's32[1]{0}', space=sflag, size = 0x4, scoped, tag = 'scoped memory for tpu_custom_call.1']
    #allocation5 [shape = 'u8[32768]{0}', space=vmem, size = 0x8000, scoped, tag = 'input window, operand 1, single buffered']
    #allocation6 [shape = 's32[1]{0}', space=sflag, size = 0x4, scoped, tag = 'scoped memory for tpu_custom_call.1']
    #allocation7 [shape = 'u8[2048]{0}', space=vmem, size = 0x800, scoped, tag = 'input window, operand 2, single buffered']
    #allocation8 [shape = 'u8[512]{0}', space=vmem, size = 0x400, scoped, tag = 'output window, operand 0, single buffered']
    %8 = vsyncpa [#allocation3], 0
    %9 = vsyncpa [#allocation6], 0
    %10 = vsyncpa [#allocation4], 0
    // Predicated region
    $region2: #{tpu_custom_call.1} parent=1 // pred_check
      _
    $region3: #{tpu_custom_call.1} parent=1 // pred_check_branch
      %12 = sbr.rel (0) target = $region5
    $region4: #{tpu_custom_call.1} parent=1 // pred_region
      %s14 = ssub.s32 64, 64
      %15 = vsyncadd [#allocation3], %s14
      %s17 = sshll.u32 [#allocation2], 4
      %s18 = int_to_ptr.vmem [resolvable:$true] %s17
      %20 = dma.hbm_to_vmem [thread:$0]  %s0, 64, %s18, [#allocation3]
    $region5: #{tpu_custom_call.1} parent=1 // pred_fallthru
      _
    // Predicated region
    $region6: #{tpu_custom_call.1} parent=1 // pred_check
      _
    $region7: #{tpu_custom_call.1} parent=1 // pred_check_branch
      %22 = sbr.rel (0) target = $region9
    $region8: #{tpu_custom_call.1} parent=1 // pred_region
      %s24 = ssub.s32 1024, 1024
      %25 = vsyncadd [#allocation6], %s24
      %s26 = sshll.u32 [#allocation5], 4
      %s27 = int_to_ptr.vmem [resolvable:$true] %s26
      %32 = dma.hbm_to_vmem [thread:$0]  %s1, 1024, %s27, [#allocation6], 256, 256, 16
    $region9: #{tpu_custom_call.1} parent=1 // pred_fallthru
      _
    // Predicated region
    $region10: #{tpu_custom_call.1} parent=1 // pred_check
      _
    $region11: #{tpu_custom_call.1} parent=1 // pred_check_branch
      %34 = sbr.rel (0) target = $region13
    $region12: #{tpu_custom_call.1} parent=1 // pred_region
      %s36 = ssub.s32 64, 64
      %37 = vsyncadd [#allocation6], %s36
      %s39 = sshll.u32 [#allocation7], 4
      %s40 = int_to_ptr.vmem [resolvable:$true] %s39
      %42 = dma.hbm_to_vmem [thread:$0]  %s2, 64, %s40, [#allocation6]
    $region13: #{tpu_custom_call.1} parent=1 // pred_fallthru
      _
    // Predicated region
    $region14: #{tpu_custom_call.1} parent=1 // pred_check
      _
    $region15: #{tpu_custom_call.1} parent=1 // pred_check_branch
      %44 = sbr.rel (0) target = $region17
    $region16: #{tpu_custom_call.1} parent=1 // pred_region
      %45 = dma.done [#allocation3], 64
    $region17: #{tpu_custom_call.1} parent=1 // pred_fallthru
      _
    // Predicated region
    $region18: #{tpu_custom_call.1} parent=1 // pred_check
      _
    $region19: #{tpu_custom_call.1} parent=1 // pred_check_branch
      %47 = sbr.rel (0) target = $region21
    $region20: #{tpu_custom_call.1} parent=1 // pred_region
      %48 = dma.done [#allocation6], 1024
    $region21: #{tpu_custom_call.1} parent=1 // pred_fallthru
      _
    // Predicated region
    $region22: #{tpu_custom_call.1} parent=1 // pred_check
      _
    $region23: #{tpu_custom_call.1} parent=1 // pred_check_branch
      %50 = sbr.rel (0) target = $region25
    $region24: #{tpu_custom_call.1} parent=1 // pred_region
      %51 = dma.done [#allocation6], 64
    $region25: #{tpu_custom_call.1} parent=1 // pred_fallthru
      _
    %v53 = vld [vmem:[#allocation2] sm:$0xf]
    %v54 = vld [vmem:[#allocation5] sm:$0xff]
    %v55 = vld [vmem:[#allocation5 + $0x8] sm:$0xff]
    %v56 = vld [vmem:[#allocation5 + $0x10] sm:$0xff]
    %v57 = vld [vmem:[#allocation5 + $0x18] sm:$0xff]
    %v58 = vld [vmem:[#allocation5 + $0x20] sm:$0xff]
    %v59 = vld [vmem:[#allocation5 + $0x28] sm:$0xff]
    %v60 = vld [vmem:[#allocation5 + $0x30] sm:$0xff]
    %v61 = vld [vmem:[#allocation5 + $0x38] sm:$0xff]
    %v70 = vunpack.c.l.b16 %v54
    %v71 = vunpack.c.h.b16 %v54
    %v72 = vunpack.c.l.b16 %v55
    %v73 = vunpack.c.h.b16 %v55
    %v74 = vunpack.c.l.b16 %v56
    %v75 = vunpack.c.h.b16 %v56
    %v76 = vunpack.c.l.b16 %v57
    %v77 = vunpack.c.h.b16 %v57
    %v78 = vunpack.c.l.b16 %v58
    %v79 = vunpack.c.h.b16 %v58
    %v80 = vunpack.c.l.b16 %v59
    %v81 = vunpack.c.h.b16 %v59
    %v82 = vunpack.c.l.b16 %v60
    %v83 = vunpack.c.h.b16 %v60
    %v84 = vunpack.c.l.b16 %v61
    %v85 = vunpack.c.h.b16 %v61
    %v86 = vpack.c.b16 %v74, %v70
    %v87 = vpack.c.b16 %v75, %v71
    %v88 = vpack.c.b16 %v76, %v72
    %v89 = vpack.c.b16 %v77, %v73
    %v90 = vpack.c.b16 %v82, %v78
    %v91 = vpack.c.b16 %v83, %v79
    %v92 = vpack.c.b16 %v84, %v80
    %v93 = vpack.c.b16 %v85, %v81
    %vm102 = vcmask 261120
    %v104 = vsel %vm102, %v53, 0
    %106 = vmatprep.subr.bf16.mxu0 0
    %107 = vmatpush1.bf16.msra.mxu0 0
    %108 = vmatprep.subr.bf16.mxu0 0
    %109 = vmatpush1.bf16.msra.mxu0 0
    %110 = vmatprep.subr.bf16.mxu0 0
    %111 = vmatpush1.bf16.msra.mxu0 0
    %112 = vmatprep.subr.bf16.mxu0 0
    %113 = vmatpush1.bf16.msra.mxu0 0
    %114 = vmatprep.subr.bf16.mxu0 0
    %115 = vmatpush1.bf16.msra.mxu0 0
    %116 = vmatprep.subr.bf16.mxu0 0
    %117 = vmatpush1.bf16.msra.mxu0 0
    %118 = vmatprep.subr.bf16.mxu0 %v91
    %119 = vmatpush1.bf16.msra.mxu0 %v90
    %120 = vmatprep.subr.bf16.mxu0 %v87
    %121 = vmatpush1.bf16.msra.mxu0 %v86
    %122 = vmatprep.subr.bf16.mxu0 0
    %123 = vmatpush2.bf16.msra.mxu0 0
    %124 = vmatprep.subr.bf16.mxu0 0
    %125 = vmatpush2.bf16.msra.mxu0 0
    %126 = vmatprep.subr.bf16.mxu0 0
    %127 = vmatpush2.bf16.msra.mxu0 0
    %128 = vmatprep.subr.bf16.mxu0 0
    %129 = vmatpush2.bf16.msra.mxu0 0
    %130 = vmatprep.subr.bf16.mxu0 0
    %131 = vmatpush2.bf16.msra.mxu0 0
    %132 = vmatprep.subr.bf16.mxu0 0
    %133 = vmatpush2.bf16.msra.mxu0 0
    %134 = vmatprep.subr.bf16.mxu0 0
    %135 = vmatpush2.bf16.msra.mxu0 0
    %136 = vmatprep.subr.bf16.mxu0 0
    %137 = vmatpush2.bf16.msra.mxu0 0
    %138 = vmatprep.mubr.bf16.mxu0 0
    %139 = vmatmul.mubr.bf16.gmra.mxu0 %v104
    %v140 = vpop.f32.mrf.mxu0
    %v141 = vadd.f32 0.0, %v140
    %v142 = vpop.f32.mrf.mxu0
    %v143 = vadd.f32 0.0, %v142
    %v144 = vpop.f32.mrf.mxu0
    %v145 = vpop.f32.mrf.mxu0
    %146 = vdwg.mxu0
    %147 = vmatprep.subr.bf16.mxu0 0
    %148 = vmatpush1.bf16.msra.mxu0 0
    %149 = vmatprep.subr.bf16.mxu0 0
    %150 = vmatpush1.bf16.msra.mxu0 0
    %151 = vmatprep.subr.bf16.mxu0 0
    %152 = vmatpush1.bf16.msra.mxu0 0
    %153 = vmatprep.subr.bf16.mxu0 0
    %154 = vmatpush1.bf16.msra.mxu0 0
    %155 = vmatprep.subr.bf16.mxu0 0
    %156 = vmatpush1.bf16.msra.mxu0 0
    %157 = vmatprep.subr.bf16.mxu0 0
    %158 = vmatpush1.bf16.msra.mxu0 0
    %159 = vmatprep.subr.bf16.mxu0 %v93
    %160 = vmatpush1.bf16.msra.mxu0 %v92
    %161 = vmatprep.subr.bf16.mxu0 %v89
    %162 = vmatpush1.bf16.msra.mxu0 %v88
    %163 = vmatprep.subr.bf16.mxu0 0
    %164 = vmatpush2.bf16.msra.mxu0 0
    %165 = vmatprep.subr.bf16.mxu0 0
    %166 = vmatpush2.bf16.msra.mxu0 0
    %167 = vmatprep.subr.bf16.mxu0 0
    %168 = vmatpush2.bf16.msra.mxu0 0
    %169 = vmatprep.subr.bf16.mxu0 0
    %170 = vmatpush2.bf16.msra.mxu0 0
    %171 = vmatprep.subr.bf16.mxu0 0
    %172 = vmatpush2.bf16.msra.mxu0 0
    %173 = vmatprep.subr.bf16.mxu0 0
    %174 = vmatpush2.bf16.msra.mxu0 0
    %175 = vmatprep.subr.bf16.mxu0 0
    %176 = vmatpush2.bf16.msra.mxu0 0
    %177 = vmatprep.subr.bf16.mxu0 0
    %178 = vmatpush2.bf16.msra.mxu0 0
    %179 = vmatprep.mubr.bf16.mxu0 0
    %180 = vmatmul.mubr.bf16.gmra.mxu0 %v104
    %v181 = vpop.f32.mrf.mxu0
    %v182 = vadd.f32 0.0, %v181
    %v183 = vpop.f32.mrf.mxu0
    %v184 = vadd.f32 0.0, %v183
    %v185 = vpop.f32.mrf.mxu0
    %v186 = vpop.f32.mrf.mxu0
    %187 = vdwg.mxu0
    %v188 = vrot.slane %v141, 4
    %v189 = vmax.f32 %v141, %v188
    %v190 = vrot.slane %v189, 2
    %v191 = vmax.f32 %v189, %v190
    %v192 = vrot.slane %v191, 1
    %v193 = vmax.f32 %v191, %v192
    %v194 = vrot.slane %v143, 4
    %v195 = vmax.f32 %v143, %v194
    %v196 = vrot.slane %v195, 2
    %v197 = vmax.f32 %v195, %v196
    %v198 = vrot.slane %v197, 1
    %v199 = vmax.f32 %v197, %v198
    %v200 = vrot.slane %v182, 4
    %v201 = vmax.f32 %v182, %v200
    %v202 = vrot.slane %v201, 2
    %v203 = vmax.f32 %v201, %v202
    %v204 = vrot.slane %v203, 1
    %v205 = vmax.f32 %v203, %v204
    %v206 = vrot.slane %v184, 4
    %v207 = vmax.f32 %v184, %v206
    %v208 = vrot.slane %v207, 2
    %v209 = vmax.f32 %v207, %v208
    %v210 = vrot.slane %v209, 1
    %v211 = vmax.f32 %v209, %v210
    %v212 = vld [vmem:[#allocation7] sm:$0xf]
    %v214 = vlaneseq
    %v215 = vshrl.u32 %v214, 7
    %v216 = vsub.s32 0, %v215
    %v217 = vrot.slane %v212, %v216
    %v218 = vlaneseq
    %v219 = vshrl.u32 %v218, 7
    %v220 = vsub.s32 1, %v219
    %v221 = vrot.slane %v212, %v220
    %v222 = vlaneseq
    %v223 = vshrl.u32 %v222, 7
    %v224 = vsub.s32 2, %v223
    %v225 = vrot.slane %v212, %v224
    %v226 = vlaneseq
    %v227 = vshrl.u32 %v226, 7
    %v228 = vsub.s32 3, %v227
    %v229 = vrot.slane %v212, %v228
    %v234 = vadd.f32 %v193, %v217
    %v235 = vadd.f32 %v199, %v221
    %v236 = vadd.f32 %v205, %v225
    %v237 = vadd.f32 %v211, %v229
    %v238 = vmax.f32 %v234, %v235
    %v239 = vmax.f32 %v238, %v236
    %v240 = vmax.f32 %v239, %v237
    %241 = vst [vmem:[#allocation8] sm:$0x1] %v240
    // Predicated region
    $region26: #{tpu_custom_call.1} parent=1 // pred_check
      _
    $region27: #{tpu_custom_call.1} parent=1 // pred_check_branch
      %243 = sbr.rel (0) target = $region29
    $region28: #{tpu_custom_call.1} parent=1 // pred_region
      %s245 = ssub.s32 16, 16
      %246 = vsyncadd [#allocation4], %s245
      %s248 = sshll.u32 [#allocation8], 4
      %s249 = int_to_ptr.vmem [resolvable:$true] %s248
      %251 = dma.vmem_to_hbm [thread:$0]  %s249, 16, %s3, [#allocation4]
    $region29: #{tpu_custom_call.1} parent=1 // pred_fallthru
      _
    // Predicated region
    $region30: #{tpu_custom_call.1} parent=1 // pred_check
      _
    $region31: #{tpu_custom_call.1} parent=1 // pred_check_branch
      %253 = sbr.rel (0) target = $region33
    $region32: #{tpu_custom_call.1} parent=1 // pred_region
      %254 = dma.done [#allocation4], 16
    $region33: #{tpu_custom_call.1} parent=1 // pred_fallthru
      _
    %255 = vsyncpa [#allocation3], 1
    %256 = vsyncpa [#allocation6], 1
    %257 = vsyncpa [#allocation4], 1

</llo_original>
